<compile_context>
chip_gen: v7x
topology: tpu7x:2x2x1
jax: 0.10.0
libtpu: 0.0.40
codegen_flags: <defaults>
</compile_context>

<pallas_src>
import functools

import jax
import jax.numpy as jnp
from jax import lax
from jax.experimental import pallas as pl
from jax.experimental.pallas import tpu as pltpu


def _round_up(v, m):
    return ((v + m - 1) // m) * m


def _softplus(t):
    # Matches torch.nn.functional.softplus (beta=1, threshold=20).
    return jnp.where(t > 20.0, t, jnp.log1p(jnp.exp(jnp.minimum(t, 20.0))))


def _vmem_budget_bytes():
    """Generation-aware scoped-VMEM budget: ~85% of physical, capped at 110 MiB.

    v5e/v6e (128 MiB physical) -> ~109 MiB; v7x (64 MiB per TC) -> ~54 MiB,
    leaving headroom for Mosaic internal scratch."""
    cap = 64 * 1024 * 1024
    try:
        info = pltpu.get_tpu_info()
        c = getattr(info, "vmem_capacity_bytes", None)
        if c:
            cap = int(c)
    except Exception:
        pass
    return min(int(cap * 0.85), 110 * 1024 * 1024)


def _auto_tiles(N, H, V, x_itemsize, w_itemsize, vmem_budget, tm=None, tv=None):
    """Pick (tm, tv).

    tm (rows): arithmetic intensity of the streamed LM-head matmul is ~tm
    FLOPs per w_lm byte, so tm ~ 512 crosses the bf16 MXU roofline on
    v5e (~240 FLOPs/B), v7x (~310) and v6e (~640 with some headroom from tv).
    tv (vocab cols): multiple of 256 (v6e/v7x MXUs are 2x256^2) when V allows,
    sized so the x tile + double-buffered w_lm tile + f32 [tm, tv] temps fit
    in ~80% of the scoped-VMEM budget, capped at 2048.
    """
    if tm is None:
        tm = 512
    tm = max(8, (int(tm) // 8) * 8)
    tm = min(tm, _round_up(N, 8))

    v_align = 256 if V >= 256 else 128
    if tv is None:
        usable = int(vmem_budget * 0.8)
        while True:
            fixed = 2 * tm * H * x_itemsize                 # x tile (dbl-buffered)
            per_col = 2 * H * w_itemsize + 3 * tm * 4       # w_lm dbl-buf + f32 temps
            cand = (usable - fixed) // per_col
            cand = (cand // v_align) * v_align
            if cand >= v_align or tm <= 8:
                break
            tm = max(8, ((tm // 2) // 8) * 8)               # shrink rows, retry
        tv = max(v_align, int(cand))
        tv = min(tv, 2048)
    tv = max(128, (int(tv) // 128) * 128)
    tv = min(tv, _round_up(V, 128))
    return tm, tv


def _lhs_kernel(*refs, use_tokens: bool, use_col_bias: bool):
    it = iter(refs)
    tok_ref = next(it) if use_tokens else None
    x_ref = next(it)
    invt_ref = next(it)
    wlm_ref = next(it)
    bias_ref = next(it) if use_col_bias else None
    conf_ref = next(it)
    m_ref = next(it)
    s_ref = next(it)
    g_ref = next(it) if use_tokens else None

    j = pl.program_id(1)
    nj = pl.num_programs(1)

    # --- per-row-block init of the online-softmax state ----------------------
    @pl.when(j == 0)
    def _init():
        m_ref[...] = jnp.full_like(m_ref, -1e30)
        s_ref[...] = jnp.zeros_like(s_ref)
        if use_tokens:
            g_ref[...] = jnp.zeros_like(g_ref)

    # --- logits for this vocab tile (native-dtype MXU, f32 accumulate) -------
    logits = jnp.dot(x_ref[...], wlm_ref[...],
                     preferred_element_type=jnp.float32)          # [tm, tv]
    z = logits * invt_ref[...]                                    # scale by 1/temp
    if use_col_bias:
        z = z + bias_ref[...]                                     # -1e30 on padded cols

    # --- online softmax update ------------------------------------------------
    m_old = m_ref[...]
    m_new = jnp.maximum(m_old, jnp.max(z, axis=-1, keepdims=True))
    alpha = jnp.exp(m_old - m_new)
    p = jnp.exp(z - m_new)
    s_ref[...] = alpha * s_ref[...] + jnp.sum(p, axis=-1, keepdims=True)
    m_ref[...] = m_new
    if use_tokens:
        tm_b, tv_b = z.shape
        col = j * tv_b + lax.broadcasted_iota(jnp.int32, (tm_b, tv_b), 1)
        g_tile = jnp.sum(jnp.where(col == tok_ref[...], p, 0.0),
                         axis=-1, keepdims=True)
        g_ref[...] = alpha * g_ref[...] + g_tile

    # --- finalize on last vocab tile -------------------------------------------
    @pl.when(j == nj - 1)
    def _fin():
        inv_s = pl.reciprocal(s_ref[...], approx=False)
        if use_tokens:
            conf = g_ref[...] * inv_s
        else:
            conf = inv_s              # max prob = exp(m_final - m_final) / s = 1 / s
        conf_ref[...] = conf.astype(conf_ref.dtype)


def lhs_forward(x, w_fc, b_fc, w_lm, tokens=None, *, tm=None, tv=None,
                matmul_dtype=None, vmem_limit_bytes=None):
    """LHSModel forward.

    x: [N, H] hidden states; w_fc: [H, 1] / [1, H] / [H]; b_fc: scalar-like;
    w_lm: [H, V] LM-head weight; tokens: optional [N] int.
    Returns confidences [N] float32.

    matmul_dtype: optional dtype (e.g. jnp.bfloat16) for the streamed LM-head
    matmul operands (x, w_lm).  Production should use bf16: halves the w_lm
    HBM stream and doubles MXU throughput; accumulation stays f32.
    Note: a token index >= V returns 0 confidence (PyTorch would raise).
    """
    x = jnp.asarray(x)
    w_lm = jnp.asarray(w_lm)
    N, H = x.shape
    V = w_lm.shape[1]

    # ---- temperature head: tiny [N, 1] matvec done by XLA in f32 (hoisted) ---
    w_fc_col = jnp.asarray(w_fc).astype(jnp.float32).reshape(H, 1)
    b_fc_s = jnp.asarray(b_fc).astype(jnp.float32).reshape(())
    t_lin = x.astype(jnp.float32) @ w_fc_col + b_fc_s               # [N, 1]
    inv_temp = 1.0 / jnp.maximum(_softplus(t_lin), 1e-5)            # [N, 1]

    # ---- optional low-precision streaming of the big matmul ------------------
    if matmul_dtype is not None:
        x_mm = x.astype(matmul_dtype)
        w_lm = w_lm.astype(matmul_dtype)
    else:
        x_mm = x

    # ---- generation-aware tiling ----------------------------------------------
    if vmem_limit_bytes is None:
        vmem_limit_bytes = _vmem_budget_bytes()
    tm, tv = _auto_tiles(N, H, V,
                         jnp.dtype(x_mm.dtype).itemsize,
                         jnp.dtype(w_lm.dtype).itemsize,
                         vmem_limit_bytes, tm=tm, tv=tv)
    n_pad = _round_up(N, tm)
    v_pad = _round_up(V, tv)
    need_col_bias = v_pad != V
    use_tokens = tokens is not None

    # ---- pad to tile multiples -------------------------------------------------
    if n_pad != N:
        x_mm = jnp.pad(x_mm, ((0, n_pad - N), (0, 0)))
        inv_temp = jnp.pad(inv_temp, ((0, n_pad - N), (0, 0)), constant_values=1.0)
    if v_pad != V:
        w_lm = jnp.pad(w_lm, ((0, 0), (0, v_pad - V)))

    grid = (n_pad // tm, v_pad // tv)

    in_specs = []
    inputs = []
    if use_tokens:
        tok2d = jnp.asarray(tokens).astype(jnp.int32).reshape(N, 1)
        if n_pad != N:
            tok2d = jnp.pad(tok2d, ((0, n_pad - N), (0, 0)))
        in_specs.append(pl.BlockSpec((tm, 1), lambda i, j: (i, 0)))
        inputs.append(tok2d)

    in_specs += [pl.BlockSpec((tm, H), lambda i, j: (i, 0)),      # x row block
                 pl.BlockSpec((tm, 1), lambda i, j: (i, 0)),      # 1/temp
                 pl.BlockSpec((H, tv), lambda i, j: (0, j))]      # w_lm vocab tile
    inputs += [x_mm, inv_temp, w_lm]

    if need_col_bias:
        col_bias = jnp.where(jnp.arange(v_pad) < V, 0.0, -1e30)
        col_bias = col_bias.astype(jnp.float32).reshape(1, v_pad)
        in_specs.append(pl.BlockSpec((1, tv), lambda i, j: (0, j)))
        inputs.append(col_bias)

    out_spec = pl.BlockSpec((tm, 1), lambda i, j: (i, 0))
    out_shape = jax.ShapeDtypeStruct((n_pad, 1), jnp.float32)

    scratch = [pltpu.VMEM((tm, 1), jnp.float32),      # running max m
               pltpu.VMEM((tm, 1), jnp.float32)]      # running sum s
    if use_tokens:
        scratch.append(pltpu.VMEM((tm, 1), jnp.float32))   # running gathered g

    kernel = functools.partial(_lhs_kernel, use_tokens=use_tokens,
                               use_col_bias=need_col_bias)

    # TODO(synk): on v7x, optionally force >= 2 row blocks (so both TensorCores
    # get work) and try pipeline_mode=pl.Buffered(3) on the w_lm spec if a
    # profile shows exposed DMA issue latency.
    conf = pl.pallas_call(
        kernel,
        out_shape=out_shape,
        grid_spec=pltpu.PrefetchScalarGridSpec(
            num_scalar_prefetch=0,
            grid=grid,
            in_specs=in_specs,
            out_specs=out_spec,
            scratch_shapes=scratch),
        compiler_params=pltpu.CompilerParams(
            dimension_semantics=("parallel", "arbitrary"),
            vmem_limit_bytes=int(vmem_limit_bytes)),
    )(*inputs)

    return conf[:N, 0]


def _reference(x, w_fc, b_fc, w_lm, tokens=None, matmul_dtype=None):
    w_fc_col = jnp.asarray(w_fc).astype(jnp.float32).reshape(-1, 1)
    b = jnp.asarray(b_fc).astype(jnp.float32).reshape(())
    temp = jnp.maximum(_softplus(x.astype(jnp.float32) @ w_fc_col + b), 1e-5)
    if matmul_dtype is not None:
        logits = jnp.dot(x.astype(matmul_dtype), w_lm.astype(matmul_dtype),
                         preferred_element_type=jnp.float32)
    else:
        logits = (x @ w_lm).astype(jnp.float32)
    probs = jax.nn.softmax(logits / temp, axis=1)
    if tokens is not None:
        return jnp.take_along_axis(probs, tokens[:, None], axis=1)[:, 0]
    return jnp.max(probs, axis=1)


if __name__ == "__main__":
    key = jax.random.PRNGKey(0)

    def make_case(k, N, H, V):
        k_x, k_wfc, k_bfc, k_wlm, k_tok = jax.random.split(k, 5)
        x = jax.random.normal(k_x, (N, H), dtype=jnp.float32)
        w_fc = jax.random.normal(k_wfc, (H, 1), dtype=jnp.float32) * 0.1
        b_fc = jax.random.normal(k_bfc, (1, 1), dtype=jnp.float32) * 0.1
        w_lm = jax.random.normal(k_wlm, (H, V), dtype=jnp.float32) * 0.1
        tokens = jax.random.randint(k_tok, (N,), 0, V, dtype=jnp.int32)
        return x, w_fc, b_fc, w_lm, tokens

    k1, k2, k3 = jax.random.split(key, 3)

    # Case 1: aligned shapes (single vocab tile), f32.
    x, w_fc, b_fc, w_lm, tokens = make_case(k1, N=8, H=32, V=128)
    for tok in (None, tokens):
        got = jax.block_until_ready(lhs_forward(x, w_fc, b_fc, w_lm, tokens=tok))
        ref = _reference(x, w_fc, b_fc, w_lm, tokens=tok)
        assert jnp.allclose(got, ref, atol=1e-5, rtol=1e-5), (got, ref)

    # Case 2: unaligned N/V with tv=128 -> 2 vocab tiles: exercises row padding,
    # the additive padded-column bias and the multi-tile online softmax (f32).
    x, w_fc, b_fc, w_lm, tokens = make_case(k2, N=10, H=32, V=200)
    for tok in (None, tokens):
        got = jax.block_until_ready(
            lhs_forward(x, w_fc, b_fc, w_lm, tokens=tok, tv=128))
        ref = _reference(x, w_fc, b_fc, w_lm, tokens=tok)
        assert jnp.allclose(got, ref, atol=1e-5, rtol=1e-5), (got, ref)

    # Case 3: bf16-streamed matmul operands (production path) + padded vocab,
    # auto-sized tiles and generation-aware VMEM budget.
    x, w_fc, b_fc, w_lm, tokens = make_case(k3, N=48, H=128, V=600)
    for tok in (None, tokens):
        got = jax.block_until_ready(
            lhs_forward(x, w_fc, b_fc, w_lm, tokens=tok,
                        matmul_dtype=jnp.bfloat16))
        ref = _reference(x, w_fc, b_fc, w_lm, tokens=tok,
                         matmul_dtype=jnp.bfloat16)
        assert jnp.allclose(got, ref, atol=2e-3, rtol=2e-3), (got, ref)

    print("KERNEL_OK")
</pallas_src>

<mosaic_0001>
module attributes {stable_mosaic.version = 11 : i64} {
  func.func @_lhs_kernel(%arg0: i32, %arg1: i32, %arg2: memref<8x32xf32, #tpu.memory_space<vmem>>, %arg3: memref<8x1xf32, #tpu.memory_space<vmem>>, %arg4: memref<32x128xf32, #tpu.memory_space<vmem>>, %arg5: memref<8x1xf32, #tpu.memory_space<vmem>>, %arg6: memref<8x1xf32, #tpu.memory_space<vmem>>, %arg7: memref<8x1xf32, #tpu.memory_space<vmem>>) attributes {dimension_semantics = [#tpu.dimension_semantics<parallel>, #tpu.dimension_semantics<arbitrary>], iteration_bounds = array<i64: 1, 1>, scalar_prefetch = 0 : i64, scratch_operands = 2 : i64, tpu.core_type = #tpu.core_type<tc>, window_params = [{transform_indices = @transform_0, window_bounds = array<i64: 8, 32>}, {transform_indices = @transform_1, window_bounds = array<i64: 8, 1>}, {transform_indices = @transform_2, window_bounds = array<i64: 32, 128>}, {transform_indices = @transform_3, window_bounds = array<i64: 8, 1>}]} {
    %c0_i32 = arith.constant 0 : i32
    %0 = arith.cmpi eq, %arg1, %c0_i32 : i32
    %1 = arith.extui %0 : i1 to i32
    %c0_i32_0 = arith.constant 0 : i32
    %2 = arith.cmpi ne, %1, %c0_i32_0 : i32
    scf.if %2 {
      %cst_18 = arith.constant -1.000000e+30 : f32
      %28 = vector.broadcast %cst_18 : f32 to vector<8x1xf32>
      %c0_19 = arith.constant 0 : index
      %c0_20 = arith.constant 0 : index
      %29 = vector.load %arg6[%c0_19, %c0_20] : memref<8x1xf32, #tpu.memory_space<vmem>>, vector<8x1xf32>
      tpu.vector_store %arg6[%c0_19, %c0_20], %28 {strides = array<i32>} : memref<8x1xf32, #tpu.memory_space<vmem>>, vector<8x1xf32>,
      %cst_21 = arith.constant 0.000000e+00 : f32
      %30 = vector.broadcast %cst_21 : f32 to vector<8x1xf32>
      %c0_22 = arith.constant 0 : index
      %c0_23 = arith.constant 0 : index
      %31 = vector.load %arg7[%c0_22, %c0_23] : memref<8x1xf32, #tpu.memory_space<vmem>>, vector<8x1xf32>
      tpu.vector_store %arg7[%c0_22, %c0_23], %30 {strides = array<i32>} : memref<8x1xf32, #tpu.memory_space<vmem>>, vector<8x1xf32>,
    } else {
    }
    %c0 = arith.constant 0 : index
    %c0_1 = arith.constant 0 : index
    %3 = vector.load %arg2[%c0, %c0_1] : memref<8x32xf32, #tpu.memory_space<vmem>>, vector<8x32xf32>
    %c0_2 = arith.constant 0 : index
    %c0_3 = arith.constant 0 : index
    %4 = vector.load %arg4[%c0_2, %c0_3] : memref<32x128xf32, #tpu.memory_space<vmem>>, vector<32x128xf32>
    %cst = arith.constant dense<0.000000e+00> : vector<8x128xf32>
    %5 = tpu.matmul %3, %4, %cst {dimension_numbers = #tpu.dot_dimension_numbers<[1], [0], [0], [1], [0, 0, 1, 1], [], []>} : vector<8x32xf32>, vector<32x128xf32>, vector<8x128xf32> -> vector<8x128xf32>
    %c0_4 = arith.constant 0 : index
    %c0_5 = arith.constant 0 : index
    %6 = vector.load %arg3[%c0_4, %c0_5] : memref<8x1xf32, #tpu.memory_space<vmem>>, vector<8x1xf32>
    %7 = vector.broadcast %6 : vector<8x1xf32> to vector<8x128xf32>
    %8 = arith.mulf %5, %7 : vector<8x128xf32>
    %c0_6 = arith.constant 0 : index
    %c0_7 = arith.constant 0 : index
    %9 = vector.load %arg6[%c0_6, %c0_7] : memref<8x1xf32, #tpu.memory_space<vmem>>, vector<8x1xf32>
    %cst_8 = arith.constant dense<0xFF800000> : vector<8xf32>
    %10 = vector.multi_reduction <maximumf>, %8, %cst_8 [1] : vector<8x128xf32> to vector<8xf32>
    %11 = vector.shape_cast %10 : vector<8xf32> to vector<8x1xf32>
    %12 = arith.maximumf %9, %11 : vector<8x1xf32>
    %13 = arith.subf %9, %12 : vector<8x1xf32>
    %14 = math.exp %13 : vector<8x1xf32>
    %15 = vector.broadcast %12 : vector<8x1xf32> to vector<8x128xf32>
    %16 = arith.subf %8, %15 : vector<8x128xf32>
    %17 = math.exp %16 : vector<8x128xf32>
    %c0_9 = arith.constant 0 : index
    %c0_10 = arith.constant 0 : index
    %18 = vector.load %arg7[%c0_9, %c0_10] : memref<8x1xf32, #tpu.memory_space<vmem>>, vector<8x1xf32>
    %19 = arith.mulf %14, %18 : vector<8x1xf32>
    %cst_11 = arith.constant dense<0.000000e+00> : vector<8xf32>
    %20 = vector.multi_reduction <add>, %17, %cst_11 [1] : vector<8x128xf32> to vector<8xf32>
    %21 = vector.shape_cast %20 : vector<8xf32> to vector<8x1xf32>
    %22 = arith.addf %19, %21 : vector<8x1xf32>
    %c0_12 = arith.constant 0 : index
    %c0_13 = arith.constant 0 : index
    %23 = vector.load %arg7[%c0_12, %c0_13] : memref<8x1xf32, #tpu.memory_space<vmem>>, vector<8x1xf32>
    tpu.vector_store %arg7[%c0_12, %c0_13], %22 {strides = array<i32>} : memref<8x1xf32, #tpu.memory_space<vmem>>, vector<8x1xf32>,
    %c0_14 = arith.constant 0 : index
    %c0_15 = arith.constant 0 : index
    %24 = vector.load %arg6[%c0_14, %c0_15] : memref<8x1xf32, #tpu.memory_space<vmem>>, vector<8x1xf32>
    tpu.vector_store %arg6[%c0_14, %c0_15], %12 {strides = array<i32>} : memref<8x1xf32, #tpu.memory_space<vmem>>, vector<8x1xf32>,
    %c0_i32_16 = arith.constant 0 : i32
    %25 = arith.cmpi eq, %arg1, %c0_i32_16 : i32
    %26 = arith.extui %25 : i1 to i32
    %c0_i32_17 = arith.constant 0 : i32
    %27 = arith.cmpi ne, %26, %c0_i32_17 : i32
    scf.if %27 {
      %c0_18 = arith.constant 0 : index
      %c0_19 = arith.constant 0 : index
      %28 = vector.load %arg7[%c0_18, %c0_19] : memref<8x1xf32, #tpu.memory_space<vmem>>, vector<8x1xf32>
      %29 = tpu.reciprocal %28 : vector<8x1xf32> -> vector<8x1xf32>
      %c0_20 = arith.constant 0 : index
      %c0_21 = arith.constant 0 : index
      %30 = vector.load %arg5[%c0_20, %c0_21] : memref<8x1xf32, #tpu.memory_space<vmem>>, vector<8x1xf32>
      tpu.vector_store %arg5[%c0_20, %c0_21], %29 {strides = array<i32>} : memref<8x1xf32, #tpu.memory_space<vmem>>, vector<8x1xf32>,
    } else {
    }
    return
  }
  func.func @transform_0(%arg0: i32, %arg1: i32) -> (i32, i32) {
    %c0_i32 = arith.constant 0 : i32
    %c0_i32_0 = arith.constant 0 : i32
    return %arg0, %c0_i32 : i32, i32
  }
  func.func @transform_1(%arg0: i32, %arg1: i32) -> (i32, i32) {
    %c0_i32 = arith.constant 0 : i32
    %c0_i32_0 = arith.constant 0 : i32
    return %arg0, %c0_i32 : i32, i32
  }
  func.func @transform_2(%arg0: i32, %arg1: i32) -> (i32, i32) {
    %c0_i32 = arith.constant 0 : i32
    %c0_i32_0 = arith.constant 0 : i32
    return %c0_i32, %arg1 : i32, i32
  }
  func.func @transform_3(%arg0: i32, %arg1: i32) -> (i32, i32) {
    %c0_i32 = arith.constant 0 : i32
    %c0_i32_0 = arith.constant 0 : i32
    return %arg0, %c0_i32 : i32, i32
  }
}

</mosaic_0001>

<llo_original>
// kernel: tpu_custom_call.1
$region0: #{tpu_custom_call.1}
  #allocation0 [shape = 'u32[]', space=smem, size = 0x4, offset = 0x4, fixed_abs, tag = 'smem constant byte address 0x4 - core index']
  #allocation1 [shape = 'u32[144,128]{1,0:T(1,128)}', space=vmem, size = 0x12000, scoped, tag = 'internal scratch']
  #allocation2 [shape = 'f32[8,1]{1,0:T(8,128)}', space=vmem, size = 0x1000, scoped, tag = 'scratch operand']
  #allocation3 [shape = 'f32[8,1]{1,0:T(8,128)}', space=vmem, size = 0x1000, scoped, tag = 'scratch operand']
  %s0 = inlined_call_operand.vmem [shape: f32[8,32], index: 0, kind: input, shape index: {}]
  %s1 = inlined_call_operand.vmem [shape: f32[8,1], index: 1, kind: input, shape index: {}]
  %s2 = inlined_call_operand.hbm [shape: f32[32,128], index: 2, kind: input, shape index: {}]
  %s3 = inlined_call_operand.vmem [shape: f32[8,1], index: 3, kind: output, shape index: {}]
  %s4 = sld [smem:[#allocation0]]
  $region34: #{tpu_custom_call.1} parent=0
    _
  %s6 = ssub.s32 1, %s4
  %s7 = scalar_select 0, %s6, %s4
  $region1: #{tpu_custom_call.1} parent=0
    #allocation4 [shape = 'u8[16384]{0}', space=vmem, size = 0x4000, scoped, tag = 'input window, operand 2, single buffered']
    #allocation5 [shape = 's32[1]{0}', space=sflag, size = 0x4, scoped, tag = 'scoped memory for tpu_custom_call.1']
    %8 = vsyncpa [#allocation5], 0
    // Predicated region
    $region2: #{tpu_custom_call.1} parent=1 // pred_check
      _
    $region3: #{tpu_custom_call.1} parent=1 // pred_check_branch
      %10 = sbr.rel (0) target = $region5
    $region4: #{tpu_custom_call.1} parent=1 // pred_region
      _
    $region5: #{tpu_custom_call.1} parent=1 // pred_fallthru
      _
    // Predicated region
    $region6: #{tpu_custom_call.1} parent=1 // pred_check
      _
    $region7: #{tpu_custom_call.1} parent=1 // pred_check_branch
      %12 = sbr.rel (0) target = $region9
    $region8: #{tpu_custom_call.1} parent=1 // pred_region
      _
    $region9: #{tpu_custom_call.1} parent=1 // pred_fallthru
      _
    // Predicated region
    $region10: #{tpu_custom_call.1} parent=1 // pred_check
      _
    $region11: #{tpu_custom_call.1} parent=1 // pred_check_branch
      %14 = sbr.rel (0) target = $region13
    $region12: #{tpu_custom_call.1} parent=1 // pred_region
      %s16 = ssub.s32 512, 512
      %17 = vsyncadd [#allocation5], %s16
      %s18 = sshll.u32 [#allocation4], 4
      %s19 = int_to_ptr.vmem [resolvable:$true] %s18
      %24 = dma.hbm_to_vmem [thread:$0]  %s2, 512, %s19, [#allocation5], 128, 128, 8
    $region13: #{tpu_custom_call.1} parent=1 // pred_fallthru
      _
    // Predicated region
    $region14: #{tpu_custom_call.1} parent=1 // pred_check
      _
    $region15: #{tpu_custom_call.1} parent=1 // pred_check_branch
      %26 = sbr.rel (0) target = $region17
    $region16: #{tpu_custom_call.1} parent=1 // pred_region
      %27 = dma.done [#allocation5], 512
    $region17: #{tpu_custom_call.1} parent=1 // pred_fallthru
      _
    %p28 = scmp.eq.s32.totalorder 0, 0
    // Predicated region
    $region18: #{tpu_custom_call.1} parent=1 // pred_check
      %p29 = pneg %p28
    $region19: #{tpu_custom_call.1} parent=1 // pred_check_branch
      %31 = sbr.rel (%p29) target = $region21
    $region20: #{tpu_custom_call.1} parent=1 // pred_region
      %vm32 = vcmask 7168
      %33 = vst.msk [vmem:[#allocation2] sm:$0xff] %vm32, -1e+30
      %34 = vst.msk [vmem:[#allocation3] sm:$0xff] %vm32, 0.0
    $region21: #{tpu_custom_call.1} parent=1 // pred_fallthru
      _
    %v35 = vld [vmem:[%s0] sm:$0xff]
    %v36 = vld [vmem:[#allocation4] sm:$0xff]
    %v37 = vld [vmem:[#allocation4 + $0x8] sm:$0xff]
    %v38 = vld [vmem:[#allocation4 + $0x10] sm:$0xff]
    %v39 = vld [vmem:[#allocation4 + $0x18] sm:$0xff]
    %vm40 = vcmask 261120
    %v42 = vsel %vm40, %v35, 0
    %44 = vmatprep.subr.mxu0 0.0
    %45 = vmatpush1.msra.mxu0 %v36
    %46 = vmatprep.subr.mxu0 0.0
    %47 = vmatpush1.msra.mxu0 %v37
    %48 = vmatprep.subr.mxu0 0.0
    %49 = vmatpush1.msra.mxu0 %v38
    %50 = vmatprep.subr.mxu0 0.0
    %51 = vmatpush1.msra.mxu0 %v39
    %52 = vmatprep.subr.mxu0 0.0
    %53 = vmatpush1.msra.mxu0 0.0
    %54 = vmatprep.subr.mxu0 0.0
    %55 = vmatpush1.msra.mxu0 0.0
    %56 = vmatprep.subr.mxu0 0.0
    %57 = vmatpush1.msra.mxu0 0.0
    %58 = vmatprep.subr.mxu0 0.0
    %59 = vmatpush1.msra.mxu0 0.0
    %60 = vmatprep.subr.mxu0 0.0
    %61 = vmatpush1.msra.mxu0 0.0
    %62 = vmatprep.subr.mxu0 0.0
    %63 = vmatpush1.msra.mxu0 0.0
    %64 = vmatprep.subr.mxu0 0.0
    %65 = vmatpush1.msra.mxu0 0.0
    %66 = vmatprep.subr.mxu0 0.0
    %67 = vmatpush1.msra.mxu0 0.0
    %68 = vmatprep.subr.mxu0 0.0
    %69 = vmatpush1.msra.mxu0 0.0
    %70 = vmatprep.subr.mxu0 0.0
    %71 = vmatpush1.msra.mxu0 0.0
    %72 = vmatprep.subr.mxu0 0.0
    %73 = vmatpush1.msra.mxu0 0.0
    %74 = vmatprep.subr.mxu0 0.0
    %75 = vmatpush1.msra.mxu0 0.0
    %76 = vmatprep.subr.mxu0 0.0
    %77 = vmatpush1.msra.mxu0 0.0
    %78 = vmatprep.subr.mxu0 0.0
    %79 = vmatpush1.msra.mxu0 0.0
    %80 = vmatprep.subr.mxu0 0.0
    %81 = vmatpush1.msra.mxu0 0.0
    %82 = vmatprep.subr.mxu0 0.0
    %83 = vmatpush1.msra.mxu0 0.0
    %84 = vmatprep.subr.mxu0 0.0
    %85 = vmatpush1.msra.mxu0 0.0
    %86 = vmatprep.subr.mxu0 0.0
    %87 = vmatpush1.msra.mxu0 0.0
    %88 = vmatprep.subr.mxu0 0.0
    %89 = vmatpush1.msra.mxu0 0.0
    %90 = vmatprep.subr.mxu0 0.0
    %91 = vmatpush1.msra.mxu0 0.0
    %92 = vmatprep.subr.mxu0 0.0
    %93 = vmatpush1.msra.mxu0 0.0
    %94 = vmatprep.subr.mxu0 0.0
    %95 = vmatpush1.msra.mxu0 0.0
    %96 = vmatprep.subr.mxu0 0.0
    %97 = vmatpush1.msra.mxu0 0.0
    %98 = vmatprep.subr.mxu0 0.0
    %99 = vmatpush1.msra.mxu0 0.0
    %100 = vmatprep.subr.mxu0 0.0
    %101 = vmatpush1.msra.mxu0 0.0
    %102 = vmatprep.subr.mxu0 0.0
    %103 = vmatpush1.msra.mxu0 0.0
    %104 = vmatprep.subr.mxu0 0.0
    %105 = vmatpush1.msra.mxu0 0.0
    %106 = vmatprep.subr.mxu0 0.0
    %107 = vmatpush1.msra.mxu0 0.0
    %108 = vmatprep.mubr.f32.mxu0 0.0
    %109 = vmatmul.mubr.f32.gmra.mrb[0].mxu0 %v42
    %v110 = vpop.f32.mrb[0].mxu0
    %v111 = vadd.f32 0.0, %v110
    %v112 = vpop.f32.mrb[0].mxu0
    %113 = vdwg.mxu0
    %v114 = vld [vmem:[%s1] sm:$0xff]
    %116 = vset.pattern.permute.xlu0 0
    %117 = vperm.xlu0 %116, %v114
    %v118 = vpop.permute.xlu0 %117
    %v120 = vmul.f32 %v111, %v118
    %v121 = vld [vmem:[#allocation2] sm:$0xff]
    %122 = vmax.xlane.f32.xlu0 %v120
    %v123 = vpop.xlane.xlu0 %122
    %v124 = vmax.f32 %v121, %v123
    %v125 = vsub.f32 %v121, %v124
    %v126 = vmul.f32 %v125, 1.442695
    %v127 = vpow.pop %v126
    %129 = vset.pattern.permute.xlu0 0
    %130 = vperm.xlu0 %129, %v124
    %v131 = vpop.permute.xlu0 %130
    %v133 = vsub.f32 %v120, %v131
    %v134 = vmul.f32 %v133, 1.442695
    %v135 = vpow.pop %v134
    %v136 = vld [vmem:[#allocation3] sm:$0xff]
    %v137 = vmul.f32 %v127, %v136
    %138 = vadd.xlane.f32.xlu0 %v135
    %v139 = vpop.xlane.xlu0 %138
    %v140 = vadd.f32 %v137, %v139
    %vm141 = vcmask 7168
    %142 = vst.msk [vmem:[#allocation3] sm:$0xff] %vm141, %v140
    %143 = vst.msk [vmem:[#allocation2] sm:$0xff] %vm141, %v124
    // Predicated region
    $region22: #{tpu_custom_call.1} parent=1 // pred_check
      %p144 = pneg %p28
    $region23: #{tpu_custom_call.1} parent=1 // pred_check_branch
      %146 = sbr.rel (%p144) target = $region25
    $region24: #{tpu_custom_call.1} parent=1 // pred_region
      %v147 = vld [vmem:[#allocation3] sm:$0xff]
      %v148 = vrcp.pop %v147
      %149 = vst.msk [vmem:[%s3] sm:$0xff] %vm141, %v148
    $region25: #{tpu_custom_call.1} parent=1 // pred_fallthru
      _
    // Predicated region
    $region26: #{tpu_custom_call.1} parent=1 // pred_check
      _
    $region27: #{tpu_custom_call.1} parent=1 // pred_check_branch
      %151 = sbr.rel (0) target = $region29
    $region28: #{tpu_custom_call.1} parent=1 // pred_region
      _
    $region29: #{tpu_custom_call.1} parent=1 // pred_fallthru
      _
    // Predicated region
    $region30: #{tpu_custom_call.1} parent=1 // pred_check
      _
    $region31: #{tpu_custom_call.1} parent=1 // pred_check_branch
      %153 = sbr.rel (0) target = $region33
    $region32: #{tpu_custom_call.1} parent=1 // pred_region
      _
    $region33: #{tpu_custom_call.1} parent=1 // pred_fallthru
      _
    %154 = vsyncpa [#allocation5], 1

</llo_original>
